<compile_context>
chip_gen: v7x
topology: tpu7x:2x2x1
jax: 0.10.0
libtpu: 0.0.40
codegen_flags: <defaults>
</compile_context>

<pallas_src>
import functools

import jax
import jax.numpy as jnp
from jax.experimental import pallas as pl
from jax.experimental.pallas import tpu as pltpu

EPS = 1e-5


def _residual_block_kernel(x_ref, mask_ref,
                           w1_ref, g1_ref, be1_ref,
                           w2_ref, g2_ref, be2_ref,
                           out_ref, *, N, H, W):
    C, NLP = out_ref.shape
    Wp = W + 2
    inv_cnt = 1.0 / float(N * H * W)

    mask = mask_ref[...]                       # (1, NLP): 1 on real pixels

    # Static tap offsets into the padded-flat spatial (lane) axis.
    offsets = [(kh - 1) * Wp + (kw - 1) for kh in range(3) for kw in range(3)]

    def conv3x3(src, w_ref):
        # src: (C, NLP) with zeros on the pad ring and the lane-padding tail.
        # shift = -offset so shifted[p] == src[p + offset]; for interior
        # output positions the read index stays inside [0, NL), so the roll
        # wrap-around only affects pad-ring / tail outputs (masked / cropped).
        taps = [src if off == 0 else pltpu.roll(src, (-off) % NLP, axis=1)
                for off in offsets]
        stacked = jnp.concatenate(taps, axis=0)               # (9*C, NLP)
        # Single MXU dot per conv: (C, 9*C) @ (9*C, NLP), f32 accumulation.
        return jnp.dot(w_ref[...], stacked,
                       preferred_element_type=jnp.float32)    # (C, NLP)

    def batchnorm(acc, g_ref, be_ref):
        # Fused single-pass masked batch statistics (biased variance).
        masked = acc * mask
        m = jnp.sum(masked, axis=-1, keepdims=True) * inv_cnt            # (C,1)
        ex2 = jnp.sum(masked * masked, axis=-1, keepdims=True) * inv_cnt  # (C,1)
        v = jnp.maximum(ex2 - m * m, 0.0)
        return (acc - m) * jax.lax.rsqrt(v + EPS) * g_ref[...] + be_ref[...]

    x = x_ref[...]                                            # (C, NLP)

    # ---- stage 1: conv1 -> bn1 -> relu ------------------------------------
    # The trailing * mask re-zeroes pad ring / tail so conv2's taps see the
    # correct zero padding.
    h1 = jnp.maximum(batchnorm(conv3x3(x, w1_ref), g1_ref, be1_ref), 0.0) * mask

    # ---- stage 2: conv2 -> bn2 -> +residual -> relu ------------------------
    h2 = batchnorm(conv3x3(h1, w2_ref), g2_ref, be2_ref)
    # Pad-ring / tail positions of out contain garbage; they are cropped in
    # the wrapper and must not be consumed directly.
    out_ref[...] = jnp.maximum(h2 + x, 0.0)


def residual_block(x, w1, b1, g1, be1, w2, b2, g2, be2):
    """x: (N, C, H, W) f32; w*: (C, C, 3, 3); b*/g*/be*: (C,)."""
    N, C, H, W = x.shape
    Hp, Wp = H + 2, W + 2
    NL = N * Hp * Wp
    NLP = ((NL + 127) // 128) * 128            # lane-pad to a multiple of 128
    f32 = jnp.float32

    # Conv biases are NOT shipped to the kernel: under training-mode
    # BatchNorm a per-channel constant bias cancels exactly in
    # (conv - batch_mean), so dropping it is mathematically exact.
    del b1, b2

    # ---- layout glue (XLA): NCHW -> channel-major padded-flat, lane-dense --
    # Tiny at these shapes; at production sizes fold this into the kernel
    # (BlockSpec index_map / in-kernel iota mask) to avoid extra HBM trips.
    xt = jnp.transpose(x.astype(f32), (1, 0, 2, 3))               # (C, N, H, W)
    xp = jnp.pad(xt, ((0, 0), (0, 0), (1, 1), (1, 1)))            # (C, N, Hp, Wp)
    x_slab = jnp.pad(xp.reshape(C, NL), ((0, 0), (0, NLP - NL)))  # (C, NLP)

    interior = jnp.pad(jnp.ones((H, W), f32), ((1, 1), (1, 1)))   # (Hp, Wp)
    mask = jnp.pad(jnp.tile(interior.reshape(-1), (N,)),
                   (0, NLP - NL)).reshape(1, NLP)                 # (1, NLP)

    def prep_w(w):   # (C_out, C_in, 3, 3) -> (C_out, 9*C_in), tap-major cols
        return jnp.transpose(w.astype(f32), (0, 2, 3, 1)).reshape(C, 9 * C)

    def col(v):      # (C,) -> (C, 1) lane-broadcastable column
        return v.astype(f32).reshape(C, 1)

    vmem = pl.BlockSpec(memory_space=pltpu.MemorySpace.VMEM)

    flops = 2 * (2 * N * H * W * C * (9 * C))                 # two 3x3 convs
    bytes_accessed = 4 * (2 * C * NLP + NLP + 2 * (9 * C * C + 2 * C))

    kernel = functools.partial(_residual_block_kernel, N=N, H=H, W=W)

    out_slab = pl.pallas_call(
        kernel,
        out_shape=jax.ShapeDtypeStruct((C, NLP), f32),
        in_specs=[vmem] * 8,
        out_specs=vmem,
        compiler_params=pltpu.CompilerParams(vmem_limit_bytes=32 * 1024 * 1024),
        cost_estimate=pl.CostEstimate(flops=flops, transcendentals=2 * C,
                                      bytes_accessed=bytes_accessed),
    )(x_slab, mask,
      prep_w(w1), col(g1), col(be1),
      prep_w(w2), col(g2), col(be2))

    # ---- layout glue back: (C, NLP) interior -> (N, C, H, W) ----------------
    out = out_slab[:, :NL].reshape(C, N, Hp, Wp)[:, :, 1:H + 1, 1:W + 1]
    return jnp.transpose(out, (1, 0, 2, 3))


def _reference(x, w1, b1, g1, be1, w2, b2, g2, be2):
    """Pure-JAX/XLA reference with identical semantics (sanity check)."""
    def conv(z, w, b):
        y = jax.lax.conv_general_dilated(
            z, w, window_strides=(1, 1), padding=((1, 1), (1, 1)),
            dimension_numbers=("NCHW", "OIHW", "NCHW"),
            precision=jax.lax.Precision.HIGHEST)
        return y + b.reshape(1, -1, 1, 1)

    def bn(z, g, be):
        m = jnp.mean(z, axis=(0, 2, 3), keepdims=True)
        v = jnp.mean((z - m) ** 2, axis=(0, 2, 3), keepdims=True)
        return (z - m) * jax.lax.rsqrt(v + EPS) * g.reshape(1, -1, 1, 1) \
            + be.reshape(1, -1, 1, 1)

    h = jnp.maximum(bn(conv(x, w1, b1), g1, be1), 0.0)
    h = bn(conv(h, w2, b2), g2, be2) + x
    return jnp.maximum(h, 0.0)


if __name__ == "__main__":
    N, C, H, W = 2, 4, 16, 16
    KSIZE = 3

    key = jax.random.PRNGKey(0)
    kx, kw1, kb1, kw2, kb2 = jax.random.split(key, 5)

    x = jax.random.normal(kx, (N, C, H, W), dtype=jnp.float32)

    # Deterministic synthetic init mimicking nn.Conv2d defaults
    # (uniform in [-1/sqrt(fan_in), 1/sqrt(fan_in)], fan_in = C*3*3).
    bound = 1.0 / (C * KSIZE * KSIZE) ** 0.5
    w1 = jax.random.uniform(kw1, (C, C, 3, 3), jnp.float32, -bound, bound)
    b1 = jax.random.uniform(kb1, (C,), jnp.float32, -bound, bound)
    w2 = jax.random.uniform(kw2, (C, C, 3, 3), jnp.float32, -bound, bound)
    b2 = jax.random.uniform(kb2, (C,), jnp.float32, -bound, bound)

    # BatchNorm affine params at PyTorch init: gamma = 1, beta = 0.
    g1 = jnp.ones((C,), jnp.float32)
    be1 = jnp.zeros((C,), jnp.float32)
    g2 = jnp.ones((C,), jnp.float32)
    be2 = jnp.zeros((C,), jnp.float32)

    out = residual_block(x, w1, b1, g1, be1, w2, b2, g2, be2)
    jax.block_until_ready(out)
    assert out.shape == (N, C, H, W) and out.dtype == jnp.float32

    ref = _reference(x, w1, b1, g1, be1, w2, b2, g2, be2)
    err = float(jnp.max(jnp.abs(out - ref)))
    assert err < 5e-2, f"max abs error vs reference too large: {err}"

    print("KERNEL_OK")
</pallas_src>

<mosaic_0001>
module attributes {stable_mosaic.version = 11 : i64} {
  func.func @_residual_block_kernel(%arg0: memref<4x768xf32, #tpu.memory_space<vmem>>, %arg1: memref<1x768xf32, #tpu.memory_space<vmem>>, %arg2: memref<4x36xf32, #tpu.memory_space<vmem>>, %arg3: memref<4x1xf32, #tpu.memory_space<vmem>>, %arg4: memref<4x1xf32, #tpu.memory_space<vmem>>, %arg5: memref<4x36xf32, #tpu.memory_space<vmem>>, %arg6: memref<4x1xf32, #tpu.memory_space<vmem>>, %arg7: memref<4x1xf32, #tpu.memory_space<vmem>>, %arg8: memref<4x768xf32, #tpu.memory_space<vmem>>) attributes {dimension_semantics = [], scalar_prefetch = 0 : i64, scratch_operands = 0 : i64, tpu.core_type = #tpu.core_type<tc>} {
    %c0 = arith.constant 0 : index
    %c0_0 = arith.constant 0 : index
    %0 = vector.load %arg1[%c0, %c0_0] : memref<1x768xf32, #tpu.memory_space<vmem>>, vector<1x768xf32>
    %c0_1 = arith.constant 0 : index
    %c0_2 = arith.constant 0 : index
    %1 = vector.load %arg0[%c0_1, %c0_2] : memref<4x768xf32, #tpu.memory_space<vmem>>, vector<4x768xf32>
    %c19_i32 = arith.constant 19 : i32
    %2 = tpu.dynamic_rotate %1 by %c19_i32 dim 1 : vector<4x768xf32>, i32 -> vector<4x768xf32>
    %c18_i32 = arith.constant 18 : i32
    %3 = tpu.dynamic_rotate %1 by %c18_i32 dim 1 : vector<4x768xf32>, i32 -> vector<4x768xf32>
    %c17_i32 = arith.constant 17 : i32
    %4 = tpu.dynamic_rotate %1 by %c17_i32 dim 1 : vector<4x768xf32>, i32 -> vector<4x768xf32>
    %c1_i32 = arith.constant 1 : i32
    %5 = tpu.dynamic_rotate %1 by %c1_i32 dim 1 : vector<4x768xf32>, i32 -> vector<4x768xf32>
    %c767_i32 = arith.constant 767 : i32
    %6 = tpu.dynamic_rotate %1 by %c767_i32 dim 1 : vector<4x768xf32>, i32 -> vector<4x768xf32>
    %c751_i32 = arith.constant 751 : i32
    %7 = tpu.dynamic_rotate %1 by %c751_i32 dim 1 : vector<4x768xf32>, i32 -> vector<4x768xf32>
    %c750_i32 = arith.constant 750 : i32
    %8 = tpu.dynamic_rotate %1 by %c750_i32 dim 1 : vector<4x768xf32>, i32 -> vector<4x768xf32>
    %c749_i32 = arith.constant 749 : i32
    %9 = tpu.dynamic_rotate %1 by %c749_i32 dim 1 : vector<4x768xf32>, i32 -> vector<4x768xf32>
    %10 = tpu.concatenate %2, %3, %4, %5, %1, %6, %7, %8, %9 in 0 : vector<4x768xf32>, vector<4x768xf32>, vector<4x768xf32>, vector<4x768xf32>, vector<4x768xf32>, vector<4x768xf32>, vector<4x768xf32>, vector<4x768xf32>, vector<4x768xf32> -> vector<36x768xf32>
    %c0_3 = arith.constant 0 : index
    %c0_4 = arith.constant 0 : index
    %11 = vector.load %arg2[%c0_3, %c0_4] : memref<4x36xf32, #tpu.memory_space<vmem>>, vector<4x36xf32>
    %cst = arith.constant dense<0.000000e+00> : vector<4x768xf32>
    %12 = tpu.matmul %11, %10, %cst {dimension_numbers = #tpu.dot_dimension_numbers<[1], [0], [0], [1], [0, 0, 1, 1], [], []>} : vector<4x36xf32>, vector<36x768xf32>, vector<4x768xf32> -> vector<4x768xf32>
    %13 = vector.broadcast %0 : vector<1x768xf32> to vector<4x768xf32>
    %14 = arith.mulf %12, %13 : vector<4x768xf32>
    %cst_5 = arith.constant dense<0.000000e+00> : vector<4xf32>
    %15 = vector.multi_reduction <add>, %14, %cst_5 [1] : vector<4x768xf32> to vector<4xf32>
    %16 = vector.shape_cast %15 : vector<4xf32> to vector<4x1xf32>
    %cst_6 = arith.constant 0.001953125 : f32
    %17 = vector.broadcast %cst_6 : f32 to vector<4x1xf32>
    %18 = arith.mulf %16, %17 : vector<4x1xf32>
    %19 = arith.mulf %14, %14 : vector<4x768xf32>
    %cst_7 = arith.constant dense<0.000000e+00> : vector<4xf32>
    %20 = vector.multi_reduction <add>, %19, %cst_7 [1] : vector<4x768xf32> to vector<4xf32>
    %21 = vector.shape_cast %20 : vector<4xf32> to vector<4x1xf32>
    %cst_8 = arith.constant 0.001953125 : f32
    %22 = vector.broadcast %cst_8 : f32 to vector<4x1xf32>
    %23 = arith.mulf %21, %22 : vector<4x1xf32>
    %24 = arith.mulf %18, %18 : vector<4x1xf32>
    %25 = arith.subf %23, %24 : vector<4x1xf32>
    %cst_9 = arith.constant 0.000000e+00 : f32
    %26 = vector.broadcast %cst_9 : f32 to vector<4x1xf32>
    %27 = arith.maximumf %25, %26 : vector<4x1xf32>
    %28 = vector.broadcast %18 : vector<4x1xf32> to vector<4x768xf32>
    %29 = arith.subf %12, %28 : vector<4x768xf32>
    %cst_10 = arith.constant 9.99999974E-6 : f32
    %30 = vector.broadcast %cst_10 : f32 to vector<4x1xf32>
    %31 = arith.addf %27, %30 : vector<4x1xf32>
    %32 = math.rsqrt %31 : vector<4x1xf32>
    %33 = vector.broadcast %32 : vector<4x1xf32> to vector<4x768xf32>
    %34 = arith.mulf %29, %33 : vector<4x768xf32>
    %c0_11 = arith.constant 0 : index
    %c0_12 = arith.constant 0 : index
    %35 = vector.load %arg3[%c0_11, %c0_12] : memref<4x1xf32, #tpu.memory_space<vmem>>, vector<4x1xf32>
    %36 = vector.broadcast %35 : vector<4x1xf32> to vector<4x768xf32>
    %37 = arith.mulf %34, %36 : vector<4x768xf32>
    %c0_13 = arith.constant 0 : index
    %c0_14 = arith.constant 0 : index
    %38 = vector.load %arg4[%c0_13, %c0_14] : memref<4x1xf32, #tpu.memory_space<vmem>>, vector<4x1xf32>
    %39 = vector.broadcast %38 : vector<4x1xf32> to vector<4x768xf32>
    %40 = arith.addf %37, %39 : vector<4x768xf32>
    %cst_15 = arith.constant 0.000000e+00 : f32
    %41 = vector.broadcast %cst_15 : f32 to vector<4x768xf32>
    %42 = arith.maximumf %40, %41 : vector<4x768xf32>
    %43 = vector.broadcast %0 : vector<1x768xf32> to vector<4x768xf32>
    %44 = arith.mulf %42, %43 : vector<4x768xf32>
    %c19_i32_16 = arith.constant 19 : i32
    %45 = tpu.dynamic_rotate %44 by %c19_i32_16 dim 1 : vector<4x768xf32>, i32 -> vector<4x768xf32>
    %c18_i32_17 = arith.constant 18 : i32
    %46 = tpu.dynamic_rotate %44 by %c18_i32_17 dim 1 : vector<4x768xf32>, i32 -> vector<4x768xf32>
    %c17_i32_18 = arith.constant 17 : i32
    %47 = tpu.dynamic_rotate %44 by %c17_i32_18 dim 1 : vector<4x768xf32>, i32 -> vector<4x768xf32>
    %c1_i32_19 = arith.constant 1 : i32
    %48 = tpu.dynamic_rotate %44 by %c1_i32_19 dim 1 : vector<4x768xf32>, i32 -> vector<4x768xf32>
    %c767_i32_20 = arith.constant 767 : i32
    %49 = tpu.dynamic_rotate %44 by %c767_i32_20 dim 1 : vector<4x768xf32>, i32 -> vector<4x768xf32>
    %c751_i32_21 = arith.constant 751 : i32
    %50 = tpu.dynamic_rotate %44 by %c751_i32_21 dim 1 : vector<4x768xf32>, i32 -> vector<4x768xf32>
    %c750_i32_22 = arith.constant 750 : i32
    %51 = tpu.dynamic_rotate %44 by %c750_i32_22 dim 1 : vector<4x768xf32>, i32 -> vector<4x768xf32>
    %c749_i32_23 = arith.constant 749 : i32
    %52 = tpu.dynamic_rotate %44 by %c749_i32_23 dim 1 : vector<4x768xf32>, i32 -> vector<4x768xf32>
    %53 = tpu.concatenate %45, %46, %47, %48, %44, %49, %50, %51, %52 in 0 : vector<4x768xf32>, vector<4x768xf32>, vector<4x768xf32>, vector<4x768xf32>, vector<4x768xf32>, vector<4x768xf32>, vector<4x768xf32>, vector<4x768xf32>, vector<4x768xf32> -> vector<36x768xf32>
    %c0_24 = arith.constant 0 : index
    %c0_25 = arith.constant 0 : index
    %54 = vector.load %arg5[%c0_24, %c0_25] : memref<4x36xf32, #tpu.memory_space<vmem>>, vector<4x36xf32>
    %cst_26 = arith.constant dense<0.000000e+00> : vector<4x768xf32>
    %55 = tpu.matmul %54, %53, %cst_26 {dimension_numbers = #tpu.dot_dimension_numbers<[1], [0], [0], [1], [0, 0, 1, 1], [], []>} : vector<4x36xf32>, vector<36x768xf32>, vector<4x768xf32> -> vector<4x768xf32>
    %56 = vector.broadcast %0 : vector<1x768xf32> to vector<4x768xf32>
    %57 = arith.mulf %55, %56 : vector<4x768xf32>
    %cst_27 = arith.constant dense<0.000000e+00> : vector<4xf32>
    %58 = vector.multi_reduction <add>, %57, %cst_27 [1] : vector<4x768xf32> to vector<4xf32>
    %59 = vector.shape_cast %58 : vector<4xf32> to vector<4x1xf32>
    %cst_28 = arith.constant 0.001953125 : f32
    %60 = vector.broadcast %cst_28 : f32 to vector<4x1xf32>
    %61 = arith.mulf %59, %60 : vector<4x1xf32>
    %62 = arith.mulf %57, %57 : vector<4x768xf32>
    %cst_29 = arith.constant dense<0.000000e+00> : vector<4xf32>
    %63 = vector.multi_reduction <add>, %62, %cst_29 [1] : vector<4x768xf32> to vector<4xf32>
    %64 = vector.shape_cast %63 : vector<4xf32> to vector<4x1xf32>
    %cst_30 = arith.constant 0.001953125 : f32
    %65 = vector.broadcast %cst_30 : f32 to vector<4x1xf32>
    %66 = arith.mulf %64, %65 : vector<4x1xf32>
    %67 = arith.mulf %61, %61 : vector<4x1xf32>
    %68 = arith.subf %66, %67 : vector<4x1xf32>
    %cst_31 = arith.constant 0.000000e+00 : f32
    %69 = vector.broadcast %cst_31 : f32 to vector<4x1xf32>
    %70 = arith.maximumf %68, %69 : vector<4x1xf32>
    %71 = vector.broadcast %61 : vector<4x1xf32> to vector<4x768xf32>
    %72 = arith.subf %55, %71 : vector<4x768xf32>
    %cst_32 = arith.constant 9.99999974E-6 : f32
    %73 = vector.broadcast %cst_32 : f32 to vector<4x1xf32>
    %74 = arith.addf %70, %73 : vector<4x1xf32>
    %75 = math.rsqrt %74 : vector<4x1xf32>
    %76 = vector.broadcast %75 : vector<4x1xf32> to vector<4x768xf32>
    %77 = arith.mulf %72, %76 : vector<4x768xf32>
    %c0_33 = arith.constant 0 : index
    %c0_34 = arith.constant 0 : index
    %78 = vector.load %arg6[%c0_33, %c0_34] : memref<4x1xf32, #tpu.memory_space<vmem>>, vector<4x1xf32>
    %79 = vector.broadcast %78 : vector<4x1xf32> to vector<4x768xf32>
    %80 = arith.mulf %77, %79 : vector<4x768xf32>
    %c0_35 = arith.constant 0 : index
    %c0_36 = arith.constant 0 : index
    %81 = vector.load %arg7[%c0_35, %c0_36] : memref<4x1xf32, #tpu.memory_space<vmem>>, vector<4x1xf32>
    %82 = vector.broadcast %81 : vector<4x1xf32> to vector<4x768xf32>
    %83 = arith.addf %80, %82 : vector<4x768xf32>
    %84 = arith.addf %83, %1 : vector<4x768xf32>
    %cst_37 = arith.constant 0.000000e+00 : f32
    %85 = vector.broadcast %cst_37 : f32 to vector<4x768xf32>
    %86 = arith.maximumf %84, %85 : vector<4x768xf32>
    %c0_38 = arith.constant 0 : index
    %c0_39 = arith.constant 0 : index
    %87 = vector.load %arg8[%c0_38, %c0_39] : memref<4x768xf32, #tpu.memory_space<vmem>>, vector<4x768xf32>
    tpu.vector_store %arg8[%c0_38, %c0_39], %86 {strides = array<i32>} : memref<4x768xf32, #tpu.memory_space<vmem>>, vector<4x768xf32>,
    return
  }
}

</mosaic_0001>

<llo_original>
// kernel: tpu_custom_call.1
$region0: #{tpu_custom_call.1}
  #allocation0 [shape = 'u32[]', space=smem, size = 0x4, offset = 0x4, fixed_abs, tag = 'smem constant byte address 0x4 - core index']
  #allocation1 [shape = 'u32[144,128]{1,0:T(1,128)}', space=vmem, size = 0x12000, scoped, tag = 'internal scratch']
  %s0 = inlined_call_operand.hbm [shape: f32[4,768], index: 0, kind: input, shape index: {}]
  %s1 = inlined_call_operand.vmem [shape: f32[1,768], index: 1, kind: input, shape index: {}]
  %s2 = inlined_call_operand.vmem [shape: f32[4,36], index: 2, kind: input, shape index: {}]
  %s3 = inlined_call_operand.vmem [shape: f32[4,1], index: 3, kind: input, shape index: {}]
  %s4 = inlined_call_operand.vmem [shape: f32[4,1], index: 4, kind: input, shape index: {}]
  %s5 = inlined_call_operand.vmem [shape: f32[4,36], index: 5, kind: input, shape index: {}]
  %s6 = inlined_call_operand.vmem [shape: f32[4,1], index: 6, kind: input, shape index: {}]
  %s7 = inlined_call_operand.vmem [shape: f32[4,1], index: 7, kind: input, shape index: {}]
  %s8 = inlined_call_operand.hbm [shape: f32[4,768], index: 8, kind: output, shape index: {}]
  %s9 = sld [smem:[#allocation0]]
  $region46: #{tpu_custom_call.1} parent=0
    _
  %s11 = ssub.s32 1, %s9
  %s12 = scalar_select 0, %s11, %s9
  $region1: #{tpu_custom_call.1} parent=0
    #allocation2 [shape = 'u8[12288]{0}', space=vmem, size = 0x3000, scoped, tag = 'input window, operand 0, single buffered']
    #allocation3 [shape = 's32[1]{0}', space=sflag, size = 0x4, scoped, tag = 'scoped memory for tpu_custom_call.1']
    #allocation4 [shape = 's32[1]{0}', space=sflag, size = 0x4, scoped, tag = 'scoped memory for tpu_custom_call.1']
    #allocation5 [shape = 'u8[12288]{0}', space=vmem, size = 0x3000, scoped, tag = 'output window, operand 0, single buffered']
    %13 = vsyncpa [#allocation3], 0
    %14 = vsyncpa [#allocation4], 0
    // Predicated region
    $region2: #{tpu_custom_call.1} parent=1 // pred_check
      _
    $region3: #{tpu_custom_call.1} parent=1 // pred_check_branch
      %16 = sbr.rel (0) target = $region5
    $region4: #{tpu_custom_call.1} parent=1 // pred_region
      %s18 = ssub.s32 384, 384
      %19 = vsyncadd [#allocation3], %s18
      %s21 = sshll.u32 [#allocation2], 4
      %s22 = int_to_ptr.vmem [resolvable:$true] %s21
      %24 = dma.hbm_to_vmem [thread:$0]  %s0, 384, %s22, [#allocation3]
    $region5: #{tpu_custom_call.1} parent=1 // pred_fallthru
      _
    // Predicated region
    $region6: #{tpu_custom_call.1} parent=1 // pred_check
      _
    $region7: #{tpu_custom_call.1} parent=1 // pred_check_branch
      %26 = sbr.rel (0) target = $region9
    $region8: #{tpu_custom_call.1} parent=1 // pred_region
      _
    $region9: #{tpu_custom_call.1} parent=1 // pred_fallthru
      _
    // Predicated region
    $region10: #{tpu_custom_call.1} parent=1 // pred_check
      _
    $region11: #{tpu_custom_call.1} parent=1 // pred_check_branch
      %28 = sbr.rel (0) target = $region13
    $region12: #{tpu_custom_call.1} parent=1 // pred_region
      _
    $region13: #{tpu_custom_call.1} parent=1 // pred_fallthru
      _
    // Predicated region
    $region14: #{tpu_custom_call.1} parent=1 // pred_check
      _
    $region15: #{tpu_custom_call.1} parent=1 // pred_check_branch
      %30 = sbr.rel (0) target = $region17
    $region16: #{tpu_custom_call.1} parent=1 // pred_region
      _
    $region17: #{tpu_custom_call.1} parent=1 // pred_fallthru
      _
    // Predicated region
    $region18: #{tpu_custom_call.1} parent=1 // pred_check
      _
    $region19: #{tpu_custom_call.1} parent=1 // pred_check_branch
      %32 = sbr.rel (0) target = $region21
    $region20: #{tpu_custom_call.1} parent=1 // pred_region
      _
    $region21: #{tpu_custom_call.1} parent=1 // pred_fallthru
      _
    // Predicated region
    $region22: #{tpu_custom_call.1} parent=1 // pred_check
      _
    $region23: #{tpu_custom_call.1} parent=1 // pred_check_branch
      %34 = sbr.rel (0) target = $region25
    $region24: #{tpu_custom_call.1} parent=1 // pred_region
      _
    $region25: #{tpu_custom_call.1} parent=1 // pred_fallthru
      _
    // Predicated region
    $region26: #{tpu_custom_call.1} parent=1 // pred_check
      _
    $region27: #{tpu_custom_call.1} parent=1 // pred_check_branch
      %36 = sbr.rel (0) target = $region29
    $region28: #{tpu_custom_call.1} parent=1 // pred_region
      _
    $region29: #{tpu_custom_call.1} parent=1 // pred_fallthru
      _
    // Predicated region
    $region30: #{tpu_custom_call.1} parent=1 // pred_check
      _
    $region31: #{tpu_custom_call.1} parent=1 // pred_check_branch
      %38 = sbr.rel (0) target = $region33
    $region32: #{tpu_custom_call.1} parent=1 // pred_region
      _
    $region33: #{tpu_custom_call.1} parent=1 // pred_fallthru
      _
    // Predicated region
    $region34: #{tpu_custom_call.1} parent=1 // pred_check
      _
    $region35: #{tpu_custom_call.1} parent=1 // pred_check_branch
      %40 = sbr.rel (0) target = $region37
    $region36: #{tpu_custom_call.1} parent=1 // pred_region
      %41 = dma.done [#allocation3], 384
    $region37: #{tpu_custom_call.1} parent=1 // pred_fallthru
      _
    %v42 = vld [vmem:[%s1] sm:$0x3f]
    %v43 = vld [vmem:[#allocation2] sm:$0xff]
    %v44 = vld [vmem:[#allocation2 + $0x8] sm:$0xff]
    %v45 = vld [vmem:[#allocation2 + $0x10] sm:$0xff]
    %v49 = vcombine.high %v43, %v43
    %v50 = vcombine.high %v44, %v44
    %v51 = vcombine.high %v45, %v45
    %55 = vrot.lane.b32.xlu0 %v43, 19
    %v56 = vpop.permute.xlu0 %55
    %57 = vrot.lane.b32.xlu0 %v49, 19
    %v58 = vpop.permute.xlu0 %57
    %59 = vrot.lane.b32.xlu0 %v44, 19
    %v60 = vpop.permute.xlu0 %59
    %61 = vrot.lane.b32.xlu0 %v50, 19
    %v62 = vpop.permute.xlu0 %61
    %63 = vrot.lane.b32.xlu0 %v45, 19
    %v64 = vpop.permute.xlu0 %63
    %65 = vrot.lane.b32.xlu0 %v51, 19
    %v66 = vpop.permute.xlu0 %65
    %v67 = vlaneseq
    %v68 = vand.u32 %v67, 127
    %vm69 = vcmp.lt.s32.totalorder %v68, 19
    %v70 = vsel %vm69, %v64, %v66
    %v71 = vsel %vm69, %v62, %v64
    %v72 = vsel %vm69, %v60, %v62
    %v73 = vsel %vm69, %v58, %v60
    %v74 = vsel %vm69, %v56, %v58
    %v75 = vsel %vm69, %v66, %v56
    %76 = vrot.lane.b32.xlu0 %v43, 18
    %v77 = vpop.permute.xlu0 %76
    %78 = vrot.lane.b32.xlu0 %v49, 18
    %v79 = vpop.permute.xlu0 %78
    %80 = vrot.lane.b32.xlu0 %v44, 18
    %v81 = vpop.permute.xlu0 %80
    %82 = vrot.lane.b32.xlu0 %v50, 18
    %v83 = vpop.permute.xlu0 %82
    %84 = vrot.lane.b32.xlu0 %v45, 18
    %v85 = vpop.permute.xlu0 %84
    %86 = vrot.lane.b32.xlu0 %v51, 18
    %v87 = vpop.permute.xlu0 %86
    %vm88 = vcmp.lt.s32.totalorder %v68, 18
    %v89 = vsel %vm88, %v85, %v87
    %v90 = vsel %vm88, %v83, %v85
    %v91 = vsel %vm88, %v81, %v83
    %v92 = vsel %vm88, %v79, %v81
    %v93 = vsel %vm88, %v77, %v79
    %v94 = vsel %vm88, %v87, %v77
    %95 = vrot.lane.b32.xlu0 %v43, 17
    %v96 = vpop.permute.xlu0 %95
    %97 = vrot.lane.b32.xlu0 %v49, 17
    %v98 = vpop.permute.xlu0 %97
    %99 = vrot.lane.b32.xlu0 %v44, 17
    %v100 = vpop.permute.xlu0 %99
    %101 = vrot.lane.b32.xlu0 %v50, 17
    %v102 = vpop.permute.xlu0 %101
    %103 = vrot.lane.b32.xlu0 %v45, 17
    %v104 = vpop.permute.xlu0 %103
    %105 = vrot.lane.b32.xlu0 %v51, 17
    %v106 = vpop.permute.xlu0 %105
    %vm107 = vcmp.lt.s32.totalorder %v68, 17
    %v108 = vsel %vm107, %v104, %v106
    %v109 = vsel %vm107, %v102, %v104
    %v110 = vsel %vm107, %v100, %v102
    %v111 = vsel %vm107, %v98, %v100
    %v112 = vsel %vm107, %v96, %v98
    %v113 = vsel %vm107, %v106, %v96
    %114 = vrot.lane.b32.xlu0 %v43, 1
    %v115 = vpop.permute.xlu0 %114
    %116 = vrot.lane.b32.xlu0 %v49, 1
    %v117 = vpop.permute.xlu0 %116
    %118 = vrot.lane.b32.xlu0 %v44, 1
    %v119 = vpop.permute.xlu0 %118
    %120 = vrot.lane.b32.xlu0 %v50, 1
    %v121 = vpop.permute.xlu0 %120
    %122 = vrot.lane.b32.xlu0 %v45, 1
    %v123 = vpop.permute.xlu0 %122
    %124 = vrot.lane.b32.xlu0 %v51, 1
    %v125 = vpop.permute.xlu0 %124
    %vm126 = vcmp.lt.s32.totalorder %v68, 1
    %v127 = vsel %vm126, %v123, %v125
    %v128 = vsel %vm126, %v121, %v123
    %v129 = vsel %vm126, %v119, %v121
    %v130 = vsel %vm126, %v117, %v119
    %v131 = vsel %vm126, %v115, %v117
    %v132 = vsel %vm126, %v125, %v115
    %133 = vrot.lane.b32.xlu0 %v43, 127
    %v134 = vpop.permute.xlu0 %133
    %135 = vrot.lane.b32.xlu0 %v49, 127
    %v136 = vpop.permute.xlu0 %135
    %137 = vrot.lane.b32.xlu0 %v44, 127
    %v138 = vpop.permute.xlu0 %137
    %139 = vrot.lane.b32.xlu0 %v50, 127
    %v140 = vpop.permute.xlu0 %139
    %141 = vrot.lane.b32.xlu0 %v45, 127
    %v142 = vpop.permute.xlu0 %141
    %143 = vrot.lane.b32.xlu0 %v51, 127
    %v144 = vpop.permute.xlu0 %143
    %vm145 = vcmp.lt.s32.totalorder %v68, 127
    %v146 = vsel %vm145, %v142, %v144
    %v147 = vsel %vm145, %v140, %v142
    %v148 = vsel %vm145, %v138, %v140
    %v149 = vsel %vm145, %v136, %v138
    %v150 = vsel %vm145, %v134, %v136
    %v151 = vsel %vm145, %v144, %v134
    %152 = vrot.lane.b32.xlu0 %v43, 111
    %v153 = vpop.permute.xlu0 %152
    %154 = vrot.lane.b32.xlu0 %v49, 111
    %v155 = vpop.permute.xlu0 %154
    %156 = vrot.lane.b32.xlu0 %v44, 111
    %v157 = vpop.permute.xlu0 %156
    %158 = vrot.lane.b32.xlu0 %v50, 111
    %v159 = vpop.permute.xlu0 %158
    %160 = vrot.lane.b32.xlu0 %v45, 111
    %v161 = vpop.permute.xlu0 %160
    %162 = vrot.lane.b32.xlu0 %v51, 111
    %v163 = vpop.permute.xlu0 %162
    %vm164 = vcmp.lt.s32.totalorder %v68, 111
    %v165 = vsel %vm164, %v161, %v163
    %v166 = vsel %vm164, %v159, %v161
    %v167 = vsel %vm164, %v157, %v159
    %v168 = vsel %vm164, %v155, %v157
    %v169 = vsel %vm164, %v153, %v155
    %v170 = vsel %vm164, %v163, %v153
    %171 = vrot.lane.b32.xlu0 %v43, 110
    %v172 = vpop.permute.xlu0 %171
    %173 = vrot.lane.b32.xlu0 %v49, 110
    %v174 = vpop.permute.xlu0 %173
    %175 = vrot.lane.b32.xlu0 %v44, 110
    %v176 = vpop.permute.xlu0 %175
    %177 = vrot.lane.b32.xlu0 %v50, 110
    %v178 = vpop.permute.xlu0 %177
    %179 = vrot.lane.b32.xlu0 %v45, 110
    %v180 = vpop.permute.xlu0 %179
    %181 = vrot.lane.b32.xlu0 %v51, 110
    %v182 = vpop.permute.xlu0 %181
    %vm183 = vcmp.lt.s32.totalorder %v68, 110
    %v184 = vsel %vm183, %v180, %v182
    %v185 = vsel %vm183, %v178, %v180
    %v186 = vsel %vm183, %v176, %v178
    %v187 = vsel %vm183, %v174, %v176
    %v188 = vsel %vm183, %v172, %v174
    %v189 = vsel %vm183, %v182, %v172
    %190 = vrot.lane.b32.xlu0 %v43, 109
    %v191 = vpop.permute.xlu0 %190
    %192 = vrot.lane.b32.xlu0 %v49, 109
    %v193 = vpop.permute.xlu0 %192
    %194 = vrot.lane.b32.xlu0 %v44, 109
    %v195 = vpop.permute.xlu0 %194
    %196 = vrot.lane.b32.xlu0 %v50, 109
    %v197 = vpop.permute.xlu0 %196
    %198 = vrot.lane.b32.xlu0 %v45, 109
    %v199 = vpop.permute.xlu0 %198
    %200 = vrot.lane.b32.xlu0 %v51, 109
    %v201 = vpop.permute.xlu0 %200
    %vm202 = vcmp.lt.s32.totalorder %v68, 109
    %v203 = vsel %vm202, %v199, %v201
    %v204 = vsel %vm202, %v197, %v199
    %v205 = vsel %vm202, %v195, %v197
    %v206 = vsel %vm202, %v193, %v195
    %v207 = vsel %vm202, %v191, %v193
    %v208 = vsel %vm202, %v201, %v191
    %v215 = vrot.slane %v94, 4
    %v216 = vrot.slane %v93, 4
    %v217 = vrot.slane %v92, 4
    %v218 = vrot.slane %v91, 4
    %v219 = vrot.slane %v90, 4
    %v220 = vrot.slane %v89, 4
    %v233 = vrot.slane %v132, 4
    %v234 = vrot.slane %v131, 4
    %v235 = vrot.slane %v130, 4
    %v236 = vrot.slane %v129, 4
    %v237 = vrot.slane %v128, 4
    %v238 = vrot.slane %v127, 4
    %v251 = vrot.slane %v150, 4
    %v252 = vrot.slane %v149, 4
    %v253 = vrot.slane %v148, 4
    %v254 = vrot.slane %v147, 4
    %v255 = vrot.slane %v146, 4
    %v256 = vrot.slane %v151, 4
    %v269 = vrot.slane %v188, 4
    %v270 = vrot.slane %v187, 4
    %v271 = vrot.slane %v186, 4
    %v272 = vrot.slane %v185, 4
    %v273 = vrot.slane %v184, 4
    %v274 = vrot.slane %v189, 4
    %vm281 = vcmask 1043456
    %v282 = vsel %vm281, %v75, %v215
    %v283 = vsel %vm281, %v74, %v216
    %v284 = vsel %vm281, %v73, %v217
    %v285 = vsel %vm281, %v72, %v218
    %v286 = vsel %vm281, %v71, %v219
    %v287 = vsel %vm281, %v70, %v220
    %v288 = vsel %vm281, %v113, %v233
    %v289 = vsel %vm281, %v112, %v234
    %v290 = vsel %vm281, %v111, %v235
    %v291 = vsel %vm281, %v110, %v236
    %v292 = vsel %vm281, %v109, %v237
    %v293 = vsel %vm281, %v108, %v238
    %v294 = vsel %vm281, %v43, %v251
    %v295 = vsel %vm281, %v49, %v252
    %v296 = vsel %vm281, %v44, %v253
    %v297 = vsel %vm281, %v50, %v254
    %v298 = vsel %vm281, %v45, %v255
    %v299 = vsel %vm281, %v51, %v256
    %v300 = vsel %vm281, %v169, %v269
    %v301 = vsel %vm281, %v168, %v270
    %v302 = vsel %vm281, %v167, %v271
    %v303 = vsel %vm281, %v166, %v272
    %v304 = vsel %vm281, %v165, %v273
    %v305 = vsel %vm281, %v170, %v274
    %v306 = vld [vmem:[%s2] sm:$0xf]
    %vm307 = vcmask 293888
    %v309 = vsel %vm307, %v306, 0
    %v312 = vsel %vm281, %v207, 0
    %v315 = vsel %vm281, %v206, 0
    %v318 = vsel %vm281, %v205, 0
    %v321 = vsel %vm281, %v204, 0
    %v324 = vsel %vm281, %v203, 0
    %v327 = vsel %vm281, %v208, 0
    %329 = vmatprep.subr.mxu0 %v283
    %330 = vmatpush1.msra.mxu0 %v282
    %331 = vmatprep.subr.mxu0 %v289
    %332 = vmatpush1.msra.mxu0 %v288
    %333 = vmatprep.subr.mxu0 %v295
    %334 = vmatpush1.msra.mxu0 %v294
    %335 = vmatprep.subr.mxu0 %v301
    %336 = vmatpush1.msra.mxu0 %v300
    %337 = vmatprep.subr.mxu0 %v315
    %338 = vmatpush1.msra.mxu0 %v312
    %339 = vmatprep.subr.mxu0 0.0
    %340 = vmatpush1.msra.mxu0 0.0
    %341 = vmatprep.subr.mxu0 0.0
    %342 = vmatpush1.msra.mxu0 0.0
    %343 = vmatprep.subr.mxu0 0.0
    %344 = vmatpush1.msra.mxu0 0.0
    %345 = vmatprep.subr.mxu0 0.0
    %346 = vmatpush1.msra.mxu0 0.0
    %347 = vmatprep.subr.mxu0 0.0
    %348 = vmatpush1.msra.mxu0 0.0
    %349 = vmatprep.subr.mxu0 0.0
    %350 = vmatpush1.msra.mxu0 0.0
    %351 = vmatprep.subr.mxu0 0.0
    %352 = vmatpush1.msra.mxu0 0.0
    %353 = vmatprep.subr.mxu0 0.0
    %354 = vmatpush1.msra.mxu0 0.0
    %355 = vmatprep.subr.mxu0 0.0
    %356 = vmatpush1.msra.mxu0 0.0
    %357 = vmatprep.subr.mxu0 0.0
    %358 = vmatpush1.msra.mxu0 0.0
    %359 = vmatprep.subr.mxu0 0.0
    %360 = vmatpush1.msra.mxu0 0.0
    %361 = vmatprep.subr.mxu0 0.0
    %362 = vmatpush1.msra.mxu0 0.0
    %363 = vmatprep.subr.mxu0 0.0
    %364 = vmatpush1.msra.mxu0 0.0
    %365 = vmatprep.subr.mxu0 0.0
    %366 = vmatpush1.msra.mxu0 0.0
    %367 = vmatprep.subr.mxu0 0.0
    %368 = vmatpush1.msra.mxu0 0.0
    %369 = vmatprep.subr.mxu0 0.0
    %370 = vmatpush1.msra.mxu0 0.0
    %371 = vmatprep.subr.mxu0 0.0
    %372 = vmatpush1.msra.mxu0 0.0
    %373 = vmatprep.subr.mxu0 0.0
    %374 = vmatpush1.msra.mxu0 0.0
    %375 = vmatprep.subr.mxu0 0.0
    %376 = vmatpush1.msra.mxu0 0.0
    %377 = vmatprep.subr.mxu0 0.0
    %378 = vmatpush1.msra.mxu0 0.0
    %379 = vmatprep.subr.mxu0 0.0
    %380 = vmatpush1.msra.mxu0 0.0
    %381 = vmatprep.subr.mxu0 0.0
    %382 = vmatpush1.msra.mxu0 0.0
    %383 = vmatprep.subr.mxu0 0.0
    %384 = vmatpush1.msra.mxu0 0.0
    %385 = vmatprep.subr.mxu0 0.0
    %386 = vmatpush1.msra.mxu0 0.0
    %387 = vmatprep.subr.mxu0 0.0
    %388 = vmatpush1.msra.mxu0 0.0
    %389 = vmatprep.subr.mxu0 0.0
    %390 = vmatpush1.msra.mxu0 0.0
    %391 = vmatprep.subr.mxu0 0.0
    %392 = vmatpush1.msra.mxu0 0.0
    %393 = vmatprep.mubr.f32.mxu0 0.0
    %394 = vmatmul.mubr.f32.gmra.mrb[0].mxu0 %v309
    %v395 = vpop.f32.mrb[0].mxu0
    %v396 = vadd.f32 0.0, %v395
    %v397 = vpop.f32.mrb[0].mxu0
    %v398 = vadd.f32 0.0, %v397
    %399 = vdwg.mxu0
    %400 = vmatprep.subr.mxu0 %v285
    %401 = vmatpush1.msra.mxu0 %v284
    %402 = vmatprep.subr.mxu0 %v291
    %403 = vmatpush1.msra.mxu0 %v290
    %404 = vmatprep.subr.mxu0 %v297
    %405 = vmatpush1.msra.mxu0 %v296
    %406 = vmatprep.subr.mxu0 %v303
    %407 = vmatpush1.msra.mxu0 %v302
    %408 = vmatprep.subr.mxu0 %v321
    %409 = vmatpush1.msra.mxu0 %v318
    %410 = vmatprep.subr.mxu0 0.0
    %411 = vmatpush1.msra.mxu0 0.0
    %412 = vmatprep.subr.mxu0 0.0
    %413 = vmatpush1.msra.mxu0 0.0
    %414 = vmatprep.subr.mxu0 0.0
    %415 = vmatpush1.msra.mxu0 0.0
    %416 = vmatprep.subr.mxu0 0.0
    %417 = vmatpush1.msra.mxu0 0.0
    %418 = vmatprep.subr.mxu0 0.0
    %419 = vmatpush1.msra.mxu0 0.0
    %420 = vmatprep.subr.mxu0 0.0
    %421 = vmatpush1.msra.mxu0 0.0
    %422 = vmatprep.subr.mxu0 0.0
    %423 = vmatpush1.msra.mxu0 0.0
    %424 = vmatprep.subr.mxu0 0.0
    %425 = vmatpush1.msra.mxu0 0.0
    %426 = vmatprep.subr.mxu0 0.0
    %427 = vmatpush1.msra.mxu0 0.0
    %428 = vmatprep.subr.mxu0 0.0
    %429 = vmatpush1.msra.mxu0 0.0
    %430 = vmatprep.subr.mxu0 0.0
    %431 = vmatpush1.msra.mxu0 0.0
    %432 = vmatprep.subr.mxu0 0.0
    %433 = vmatpush1.msra.mxu0 0.0
    %434 = vmatprep.subr.mxu0 0.0
    %435 = vmatpush1.msra.mxu0 0.0
    %436 = vmatprep.subr.mxu0 0.0
    %437 = vmatpush1.msra.mxu0 0.0
    %438 = vmatprep.subr.mxu0 0.0
    %439 = vmatpush1.msra.mxu0 0.0
    %440 = vmatprep.subr.mxu0 0.0
    %441 = vmatpush1.msra.mxu0 0.0
    %442 = vmatprep.subr.mxu0 0.0
    %443 = vmatpush1.msra.mxu0 0.0
    %444 = vmatprep.subr.mxu0 0.0
    %445 = vmatpush1.msra.mxu0 0.0
    %446 = vmatprep.subr.mxu0 0.0
    %447 = vmatpush1.msra.mxu0 0.0
    %448 = vmatprep.subr.mxu0 0.0
    %449 = vmatpush1.msra.mxu0 0.0
    %450 = vmatprep.subr.mxu0 0.0
    %451 = vmatpush1.msra.mxu0 0.0
    %452 = vmatprep.subr.mxu0 0.0
    %453 = vmatpush1.msra.mxu0 0.0
    %454 = vmatprep.subr.mxu0 0.0
    %455 = vmatpush1.msra.mxu0 0.0
    %456 = vmatprep.subr.mxu0 0.0
    %457 = vmatpush1.msra.mxu0 0.0
    %458 = vmatprep.subr.mxu0 0.0
    %459 = vmatpush1.msra.mxu0 0.0
    %460 = vmatprep.subr.mxu0 0.0
    %461 = vmatpush1.msra.mxu0 0.0
    %462 = vmatprep.subr.mxu0 0.0
    %463 = vmatpush1.msra.mxu0 0.0
    %464 = vmatprep.mubr.f32.mxu0 0.0
    %465 = vmatmul.mubr.f32.gmra.mrb[0].mxu0 %v309
    %v466 = vpop.f32.mrb[0].mxu0
    %v467 = vadd.f32 0.0, %v466
    %v468 = vpop.f32.mrb[0].mxu0
    %v469 = vadd.f32 0.0, %v468
    %470 = vdwg.mxu0
    %471 = vmatprep.subr.mxu0 %v287
    %472 = vmatpush1.msra.mxu0 %v286
    %473 = vmatprep.subr.mxu0 %v293
    %474 = vmatpush1.msra.mxu0 %v292
    %475 = vmatprep.subr.mxu0 %v299
    %476 = vmatpush1.msra.mxu0 %v298
    %477 = vmatprep.subr.mxu0 %v305
    %478 = vmatpush1.msra.mxu0 %v304
    %479 = vmatprep.subr.mxu0 %v327
    %480 = vmatpush1.msra.mxu0 %v324
    %481 = vmatprep.subr.mxu0 0.0
    %482 = vmatpush1.msra.mxu0 0.0
    %483 = vmatprep.subr.mxu0 0.0
    %484 = vmatpush1.msra.mxu0 0.0
    %485 = vmatprep.subr.mxu0 0.0
    %486 = vmatpush1.msra.mxu0 0.0
    %487 = vmatprep.subr.mxu0 0.0
    %488 = vmatpush1.msra.mxu0 0.0
    %489 = vmatprep.subr.mxu0 0.0
    %490 = vmatpush1.msra.mxu0 0.0
    %491 = vmatprep.subr.mxu0 0.0
    %492 = vmatpush1.msra.mxu0 0.0
    %493 = vmatprep.subr.mxu0 0.0
    %494 = vmatpush1.msra.mxu0 0.0
    %495 = vmatprep.subr.mxu0 0.0
    %496 = vmatpush1.msra.mxu0 0.0
    %497 = vmatprep.subr.mxu0 0.0
    %498 = vmatpush1.msra.mxu0 0.0
    %499 = vmatprep.subr.mxu0 0.0
    %500 = vmatpush1.msra.mxu0 0.0
    %501 = vmatprep.subr.mxu0 0.0
    %502 = vmatpush1.msra.mxu0 0.0
    %503 = vmatprep.subr.mxu0 0.0
    %504 = vmatpush1.msra.mxu0 0.0
    %505 = vmatprep.subr.mxu0 0.0
    %506 = vmatpush1.msra.mxu0 0.0
    %507 = vmatprep.subr.mxu0 0.0
    %508 = vmatpush1.msra.mxu0 0.0
    %509 = vmatprep.subr.mxu0 0.0
    %510 = vmatpush1.msra.mxu0 0.0
    %511 = vmatprep.subr.mxu0 0.0
    %512 = vmatpush1.msra.mxu0 0.0
    %513 = vmatprep.subr.mxu0 0.0
    %514 = vmatpush1.msra.mxu0 0.0
    %515 = vmatprep.subr.mxu0 0.0
    %516 = vmatpush1.msra.mxu0 0.0
    %517 = vmatprep.subr.mxu0 0.0
    %518 = vmatpush1.msra.mxu0 0.0
    %519 = vmatprep.subr.mxu0 0.0
    %520 = vmatpush1.msra.mxu0 0.0
    %521 = vmatprep.subr.mxu0 0.0
    %522 = vmatpush1.msra.mxu0 0.0
    %523 = vmatprep.subr.mxu0 0.0
    %524 = vmatpush1.msra.mxu0 0.0
    %525 = vmatprep.subr.mxu0 0.0
    %526 = vmatpush1.msra.mxu0 0.0
    %527 = vmatprep.subr.mxu0 0.0
    %528 = vmatpush1.msra.mxu0 0.0
    %529 = vmatprep.subr.mxu0 0.0
    %530 = vmatpush1.msra.mxu0 0.0
    %531 = vmatprep.subr.mxu0 0.0
    %532 = vmatpush1.msra.mxu0 0.0
    %533 = vmatprep.subr.mxu0 0.0
    %534 = vmatpush1.msra.mxu0 0.0
    %535 = vmatprep.mubr.f32.mxu0 0.0
    %536 = vmatmul.mubr.f32.gmra.mrb[0].mxu0 %v309
    %v537 = vpop.f32.mrb[0].mxu0
    %v538 = vadd.f32 0.0, %v537
    %v539 = vpop.f32.mrb[0].mxu0
    %v540 = vadd.f32 0.0, %v539
    %541 = vdwg.mxu0
    %v543 = vlaneseq
    %v544 = vshrl.u32 %v543, 7
    %v545 = vsub.s32 0, %v544
    %v546 = vrot.slane %v42, %v545
    %v547 = vlaneseq
    %v548 = vshrl.u32 %v547, 7
    %v549 = vsub.s32 1, %v548
    %v550 = vrot.slane %v42, %v549
    %v551 = vlaneseq
    %v552 = vshrl.u32 %v551, 7
    %v553 = vsub.s32 2, %v552
    %v554 = vrot.slane %v42, %v553
    %v555 = vlaneseq
    %v556 = vshrl.u32 %v555, 7
    %v557 = vsub.s32 3, %v556
    %v558 = vrot.slane %v42, %v557
    %v559 = vlaneseq
    %v560 = vshrl.u32 %v559, 7
    %v561 = vsub.s32 4, %v560
    %v562 = vrot.slane %v42, %v561
    %v563 = vlaneseq
    %v564 = vshrl.u32 %v563, 7
    %v565 = vsub.s32 5, %v564
    %v566 = vrot.slane %v42, %v565
    %v573 = vmul.f32 %v396, %v546
    %v574 = vmul.f32 %v398, %v550
    %v575 = vmul.f32 %v467, %v554
    %v576 = vmul.f32 %v469, %v558
    %v577 = vmul.f32 %v538, %v562
    %v578 = vmul.f32 %v540, %v566
    %v579 = vsel %vm281, %v573, 0.0
    %v580 = vsel %vm281, %v574, 0.0
    %v581 = vadd.f32 %v579, %v580
    %v582 = vsel %vm281, %v575, 0.0
    %v583 = vadd.f32 %v581, %v582
    %v584 = vsel %vm281, %v576, 0.0
    %v585 = vadd.f32 %v583, %v584
    %v586 = vsel %vm281, %v577, 0.0
    %v587 = vadd.f32 %v585, %v586
    %v588 = vsel %vm281, %v578, 0.0
    %v589 = vadd.f32 %v587, %v588
    %590 = vadd.xlane.f32.xlu0 %v589
    %v591 = vpop.xlane.xlu0 %590
    %v592 = vmul.f32 %v591, 0.001953125
    %v593 = vmul.f32 %v573, %v573
    %v594 = vmul.f32 %v574, %v574
    %v595 = vmul.f32 %v575, %v575
    %v596 = vmul.f32 %v576, %v576
    %v597 = vmul.f32 %v577, %v577
    %v598 = vmul.f32 %v578, %v578
    %v599 = vsel %vm281, %v593, 0.0
    %v600 = vsel %vm281, %v594, 0.0
    %v601 = vadd.f32 %v599, %v600
    %v602 = vsel %vm281, %v595, 0.0
    %v603 = vadd.f32 %v601, %v602
    %v604 = vsel %vm281, %v596, 0.0
    %v605 = vadd.f32 %v603, %v604
    %v606 = vsel %vm281, %v597, 0.0
    %v607 = vadd.f32 %v605, %v606
    %v608 = vsel %vm281, %v598, 0.0
    %v609 = vadd.f32 %v607, %v608
    %610 = vadd.xlane.f32.xlu0 %v609
    %v611 = vpop.xlane.xlu0 %610
    %v612 = vmul.f32 %v611, 0.001953125
    %v613 = vmul.f32 %v592, %v592
    %v614 = vsub.f32 %v612, %v613
    %v615 = vmax.f32 %v614, 0.0
    %v616 = vsub.f32 %v396, %v592
    %v617 = vsub.f32 %v398, %v592
    %v618 = vsub.f32 %v467, %v592
    %v619 = vsub.f32 %v469, %v592
    %v620 = vsub.f32 %v538, %v592
    %v621 = vsub.f32 %v540, %v592
    %v622 = vadd.f32 %v615, 1e-05
    %v623 = vrsqrt.pop %v622
    %v624 = vmul.f32 %v616, %v623
    %v625 = vmul.f32 %v617, %v623
    %v626 = vmul.f32 %v618, %v623
    %v627 = vmul.f32 %v619, %v623
    %v628 = vmul.f32 %v620, %v623
    %v629 = vmul.f32 %v621, %v623
    %v630 = vld [vmem:[%s3] sm:$0xf]
    %632 = vset.pattern.permute.xlu0 0
    %633 = vperm.xlu0 %632, %v630
    %v634 = vpop.permute.xlu0 %633
    %v636 = vmul.f32 %v624, %v634
    %v637 = vmul.f32 %v625, %v634
    %v638 = vmul.f32 %v626, %v634
    %v639 = vmul.f32 %v627, %v634
    %v640 = vmul.f32 %v628, %v634
    %v641 = vmul.f32 %v629, %v634
    %v642 = vld [vmem:[%s4] sm:$0xf]
    %644 = vset.pattern.permute.xlu0 0
    %645 = vperm.xlu0 %644, %v642
    %v646 = vpop.permute.xlu0 %645
    %v648 = vadd.f32 %v636, %v646
    %v649 = vadd.f32 %v637, %v646
    %v650 = vadd.f32 %v638, %v646
    %v651 = vadd.f32 %v639, %v646
    %v652 = vadd.f32 %v640, %v646
    %v653 = vadd.f32 %v641, %v646
    %v654 = vmax.f32 %v648, 0.0
    %v655 = vmax.f32 %v649, 0.0
    %v656 = vmax.f32 %v650, 0.0
    %v657 = vmax.f32 %v651, 0.0
    %v658 = vmax.f32 %v652, 0.0
    %v659 = vmax.f32 %v653, 0.0
    %v660 = vmul.f32 %v654, %v546
    %v661 = vmul.f32 %v655, %v550
    %v662 = vmul.f32 %v656, %v554
    %v663 = vmul.f32 %v657, %v558
    %v664 = vmul.f32 %v658, %v562
    %v665 = vmul.f32 %v659, %v566
    %666 = vrot.lane.b32.xlu0 %v660, 19
    %v667 = vpop.permute.xlu0 %666
    %668 = vrot.lane.b32.xlu0 %v661, 19
    %v669 = vpop.permute.xlu0 %668
    %670 = vrot.lane.b32.xlu0 %v662, 19
    %v671 = vpop.permute.xlu0 %670
    %672 = vrot.lane.b32.xlu0 %v663, 19
    %v673 = vpop.permute.xlu0 %672
    %674 = vrot.lane.b32.xlu0 %v664, 19
    %v675 = vpop.permute.xlu0 %674
    %676 = vrot.lane.b32.xlu0 %v665, 19
    %v677 = vpop.permute.xlu0 %676
    %v678 = vsel %vm69, %v675, %v677
    %v679 = vsel %vm69, %v673, %v675
    %v680 = vsel %vm69, %v671, %v673
    %v681 = vsel %vm69, %v669, %v671
    %v682 = vsel %vm69, %v667, %v669
    %v683 = vsel %vm69, %v677, %v667
    %684 = vrot.lane.b32.xlu0 %v660, 18
    %v685 = vpop.permute.xlu0 %684
    %686 = vrot.lane.b32.xlu0 %v661, 18
    %v687 = vpop.permute.xlu0 %686
    %688 = vrot.lane.b32.xlu0 %v662, 18
    %v689 = vpop.permute.xlu0 %688
    %690 = vrot.lane.b32.xlu0 %v663, 18
    %v691 = vpop.permute.xlu0 %690
    %692 = vrot.lane.b32.xlu0 %v664, 18
    %v693 = vpop.permute.xlu0 %692
    %694 = vrot.lane.b32.xlu0 %v665, 18
    %v695 = vpop.permute.xlu0 %694
    %v696 = vsel %vm88, %v693, %v695
    %v697 = vsel %vm88, %v691, %v693
    %v698 = vsel %vm88, %v689, %v691
    %v699 = vsel %vm88, %v687, %v689
    %v700 = vsel %vm88, %v685, %v687
    %v701 = vsel %vm88, %v695, %v685
    %702 = vrot.lane.b32.xlu0 %v660, 17
    %v703 = vpop.permute.xlu0 %702
    %704 = vrot.lane.b32.xlu0 %v661, 17
    %v705 = vpop.permute.xlu0 %704
    %706 = vrot.lane.b32.xlu0 %v662, 17
    %v707 = vpop.permute.xlu0 %706
    %708 = vrot.lane.b32.xlu0 %v663, 17
    %v709 = vpop.permute.xlu0 %708
    %710 = vrot.lane.b32.xlu0 %v664, 17
    %v711 = vpop.permute.xlu0 %710
    %712 = vrot.lane.b32.xlu0 %v665, 17
    %v713 = vpop.permute.xlu0 %712
    %v714 = vsel %vm107, %v711, %v713
    %v715 = vsel %vm107, %v709, %v711
    %v716 = vsel %vm107, %v707, %v709
    %v717 = vsel %vm107, %v705, %v707
    %v718 = vsel %vm107, %v703, %v705
    %v719 = vsel %vm107, %v713, %v703
    %720 = vrot.lane.b32.xlu0 %v660, 1
    %v721 = vpop.permute.xlu0 %720
    %722 = vrot.lane.b32.xlu0 %v661, 1
    %v723 = vpop.permute.xlu0 %722
    %724 = vrot.lane.b32.xlu0 %v662, 1
    %v725 = vpop.permute.xlu0 %724
    %726 = vrot.lane.b32.xlu0 %v663, 1
    %v727 = vpop.permute.xlu0 %726
    %728 = vrot.lane.b32.xlu0 %v664, 1
    %v729 = vpop.permute.xlu0 %728
    %730 = vrot.lane.b32.xlu0 %v665, 1
    %v731 = vpop.permute.xlu0 %730
    %v732 = vsel %vm126, %v729, %v731
    %v733 = vsel %vm126, %v727, %v729
    %v734 = vsel %vm126, %v725, %v727
    %v735 = vsel %vm126, %v723, %v725
    %v736 = vsel %vm126, %v721, %v723
    %v737 = vsel %vm126, %v731, %v721
    %738 = vrot.lane.b32.xlu0 %v660, 127
    %v739 = vpop.permute.xlu0 %738
    %740 = vrot.lane.b32.xlu0 %v661, 127
    %v741 = vpop.permute.xlu0 %740
    %742 = vrot.lane.b32.xlu0 %v662, 127
    %v743 = vpop.permute.xlu0 %742
    %744 = vrot.lane.b32.xlu0 %v663, 127
    %v745 = vpop.permute.xlu0 %744
    %746 = vrot.lane.b32.xlu0 %v664, 127
    %v747 = vpop.permute.xlu0 %746
    %748 = vrot.lane.b32.xlu0 %v665, 127
    %v749 = vpop.permute.xlu0 %748
    %v750 = vsel %vm145, %v747, %v749
    %v751 = vsel %vm145, %v745, %v747
    %v752 = vsel %vm145, %v743, %v745
    %v753 = vsel %vm145, %v741, %v743
    %v754 = vsel %vm145, %v739, %v741
    %v755 = vsel %vm145, %v749, %v739
    %756 = vrot.lane.b32.xlu0 %v660, 111
    %v757 = vpop.permute.xlu0 %756
    %758 = vrot.lane.b32.xlu0 %v661, 111
    %v759 = vpop.permute.xlu0 %758
    %760 = vrot.lane.b32.xlu0 %v662, 111
    %v761 = vpop.permute.xlu0 %760
    %762 = vrot.lane.b32.xlu0 %v663, 111
    %v763 = vpop.permute.xlu0 %762
    %764 = vrot.lane.b32.xlu0 %v664, 111
    %v765 = vpop.permute.xlu0 %764
    %766 = vrot.lane.b32.xlu0 %v665, 111
    %v767 = vpop.permute.xlu0 %766
    %v768 = vsel %vm164, %v765, %v767
    %v769 = vsel %vm164, %v763, %v765
    %v770 = vsel %vm164, %v761, %v763
    %v771 = vsel %vm164, %v759, %v761
    %v772 = vsel %vm164, %v757, %v759
    %v773 = vsel %vm164, %v767, %v757
    %774 = vrot.lane.b32.xlu0 %v660, 110
    %v775 = vpop.permute.xlu0 %774
    %776 = vrot.lane.b32.xlu0 %v661, 110
    %v777 = vpop.permute.xlu0 %776
    %778 = vrot.lane.b32.xlu0 %v662, 110
    %v779 = vpop.permute.xlu0 %778
    %780 = vrot.lane.b32.xlu0 %v663, 110
    %v781 = vpop.permute.xlu0 %780
    %782 = vrot.lane.b32.xlu0 %v664, 110
    %v783 = vpop.permute.xlu0 %782
    %784 = vrot.lane.b32.xlu0 %v665, 110
    %v785 = vpop.permute.xlu0 %784
    %v786 = vsel %vm183, %v783, %v785
    %v787 = vsel %vm183, %v781, %v783
    %v788 = vsel %vm183, %v779, %v781
    %v789 = vsel %vm183, %v777, %v779
    %v790 = vsel %vm183, %v775, %v777
    %v791 = vsel %vm183, %v785, %v775
    %792 = vrot.lane.b32.xlu0 %v660, 109
    %v793 = vpop.permute.xlu0 %792
    %794 = vrot.lane.b32.xlu0 %v661, 109
    %v795 = vpop.permute.xlu0 %794
    %796 = vrot.lane.b32.xlu0 %v662, 109
    %v797 = vpop.permute.xlu0 %796
    %798 = vrot.lane.b32.xlu0 %v663, 109
    %v799 = vpop.permute.xlu0 %798
    %800 = vrot.lane.b32.xlu0 %v664, 109
    %v801 = vpop.permute.xlu0 %800
    %802 = vrot.lane.b32.xlu0 %v665, 109
    %v803 = vpop.permute.xlu0 %802
    %v804 = vsel %vm202, %v801, %v803
    %v805 = vsel %vm202, %v799, %v801
    %v806 = vsel %vm202, %v797, %v799
    %v807 = vsel %vm202, %v795, %v797
    %v808 = vsel %vm202, %v793, %v795
    %v809 = vsel %vm202, %v803, %v793
    %v816 = vrot.slane %v701, 4
    %v817 = vrot.slane %v700, 4
    %v818 = vrot.slane %v699, 4
    %v819 = vrot.slane %v698, 4
    %v820 = vrot.slane %v697, 4
    %v821 = vrot.slane %v696, 4
    %v834 = vrot.slane %v737, 4
    %v835 = vrot.slane %v736, 4
    %v836 = vrot.slane %v735, 4
    %v837 = vrot.slane %v734, 4
    %v838 = vrot.slane %v733, 4
    %v839 = vrot.slane %v732, 4
    %v852 = vrot.slane %v754, 4
    %v853 = vrot.slane %v753, 4
    %v854 = vrot.slane %v752, 4
    %v855 = vrot.slane %v751, 4
    %v856 = vrot.slane %v750, 4
    %v857 = vrot.slane %v755, 4
    %v870 = vrot.slane %v790, 4
    %v871 = vrot.slane %v789, 4
    %v872 = vrot.slane %v788, 4
    %v873 = vrot.slane %v787, 4
    %v874 = vrot.slane %v786, 4
    %v875 = vrot.slane %v791, 4
    %v882 = vsel %vm281, %v683, %v816
    %v883 = vsel %vm281, %v682, %v817
    %v884 = vsel %vm281, %v681, %v818
    %v885 = vsel %vm281, %v680, %v819
    %v886 = vsel %vm281, %v679, %v820
    %v887 = vsel %vm281, %v678, %v821
    %v888 = vsel %vm281, %v719, %v834
    %v889 = vsel %vm281, %v718, %v835
    %v890 = vsel %vm281, %v717, %v836
    %v891 = vsel %vm281, %v716, %v837
    %v892 = vsel %vm281, %v715, %v838
    %v893 = vsel %vm281, %v714, %v839
    %v894 = vsel %vm281, %v660, %v852
    %v895 = vsel %vm281, %v661, %v853
    %v896 = vsel %vm281, %v662, %v854
    %v897 = vsel %vm281, %v663, %v855
    %v898 = vsel %vm281, %v664, %v856
    %v899 = vsel %vm281, %v665, %v857
    %v900 = vsel %vm281, %v772, %v870
    %v901 = vsel %vm281, %v771, %v871
    %v902 = vsel %vm281, %v770, %v872
    %v903 = vsel %vm281, %v769, %v873
    %v904 = vsel %vm281, %v768, %v874
    %v905 = vsel %vm281, %v773, %v875
    %v906 = vld [vmem:[%s5] sm:$0xf]
    %v908 = vsel %vm307, %v906, 0
    %v911 = vsel %vm281, %v808, 0
    %v914 = vsel %vm281, %v807, 0
    %v917 = vsel %vm281, %v806, 0
    %v920 = vsel %vm281, %v805, 0
    %v923 = vsel %vm281, %v804, 0
    %v926 = vsel %vm281, %v809, 0
    %928 = vmatprep.subr.mxu0 %v883
    %929 = vmatpush1.msra.mxu0 %v882
    %930 = vmatprep.subr.mxu0 %v889
    %931 = vmatpush1.msra.mxu0 %v888
    %932 = vmatprep.subr.mxu0 %v895
    %933 = vmatpush1.msra.mxu0 %v894
    %934 = vmatprep.subr.mxu0 %v901
    %935 = vmatpush1.msra.mxu0 %v900
    %936 = vmatprep.subr.mxu0 %v914
    %937 = vmatpush1.msra.mxu0 %v911
    %938 = vmatprep.subr.mxu0 0.0
    %939 = vmatpush1.msra.mxu0 0.0
    %940 = vmatprep.subr.mxu0 0.0
    %941 = vmatpush1.msra.mxu0 0.0
    %942 = vmatprep.subr.mxu0 0.0
    %943 = vmatpush1.msra.mxu0 0.0
    %944 = vmatprep.subr.mxu0 0.0
    %945 = vmatpush1.msra.mxu0 0.0
    %946 = vmatprep.subr.mxu0 0.0
    %947 = vmatpush1.msra.mxu0 0.0
    %948 = vmatprep.subr.mxu0 0.0
    %949 = vmatpush1.msra.mxu0 0.0
    %950 = vmatprep.subr.mxu0 0.0
    %951 = vmatpush1.msra.mxu0 0.0
    %952 = vmatprep.subr.mxu0 0.0
    %953 = vmatpush1.msra.mxu0 0.0
    %954 = vmatprep.subr.mxu0 0.0
    %955 = vmatpush1.msra.mxu0 0.0
    %956 = vmatprep.subr.mxu0 0.0
    %957 = vmatpush1.msra.mxu0 0.0
    %958 = vmatprep.subr.mxu0 0.0
    %959 = vmatpush1.msra.mxu0 0.0
    %960 = vmatprep.subr.mxu0 0.0
    %961 = vmatpush1.msra.mxu0 0.0
    %962 = vmatprep.subr.mxu0 0.0
    %963 = vmatpush1.msra.mxu0 0.0
    %964 = vmatprep.subr.mxu0 0.0
    %965 = vmatpush1.msra.mxu0 0.0
    %966 = vmatprep.subr.mxu0 0.0
    %967 = vmatpush1.msra.mxu0 0.0
    %968 = vmatprep.subr.mxu0 0.0
    %969 = vmatpush1.msra.mxu0 0.0
    %970 = vmatprep.subr.mxu0 0.0
    %971 = vmatpush1.msra.mxu0 0.0
    %972 = vmatprep.subr.mxu0 0.0
    %973 = vmatpush1.msra.mxu0 0.0
    %974 = vmatprep.subr.mxu0 0.0
    %975 = vmatpush1.msra.mxu0 0.0
    %976 = vmatprep.subr.mxu0 0.0
    %977 = vmatpush1.msra.mxu0 0.0
    %978 = vmatprep.subr.mxu0 0.0
    %979 = vmatpush1.msra.mxu0 0.0
    %980 = vmatprep.subr.mxu0 0.0
    %981 = vmatpush1.msra.mxu0 0.0
    %982 = vmatprep.subr.mxu0 0.0
    %983 = vmatpush1.msra.mxu0 0.0
    %984 = vmatprep.subr.mxu0 0.0
    %985 = vmatpush1.msra.mxu0 0.0
    %986 = vmatprep.subr.mxu0 0.0
    %987 = vmatpush1.msra.mxu0 0.0
    %988 = vmatprep.subr.mxu0 0.0
    %989 = vmatpush1.msra.mxu0 0.0
    %990 = vmatprep.subr.mxu0 0.0
    %991 = vmatpush1.msra.mxu0 0.0
    %992 = vmatprep.mubr.f32.mxu0 0.0
    %993 = vmatmul.mubr.f32.gmra.mrb[0].mxu0 %v908
    %v994 = vpop.f32.mrb[0].mxu0
    %v995 = vadd.f32 0.0, %v994
    %v996 = vpop.f32.mrb[0].mxu0
    %v997 = vadd.f32 0.0, %v996
    %998 = vdwg.mxu0
    %999 = vmatprep.subr.mxu0 %v885
    %1000 = vmatpush1.msra.mxu0 %v884
    %1001 = vmatprep.subr.mxu0 %v891
    %1002 = vmatpush1.msra.mxu0 %v890
    %1003 = vmatprep.subr.mxu0 %v897
    %1004 = vmatpush1.msra.mxu0 %v896
    %1005 = vmatprep.subr.mxu0 %v903
    %1006 = vmatpush1.msra.mxu0 %v902
    %1007 = vmatprep.subr.mxu0 %v920
    %1008 = vmatpush1.msra.mxu0 %v917
    %1009 = vmatprep.subr.mxu0 0.0
    %1010 = vmatpush1.msra.mxu0 0.0
    %1011 = vmatprep.subr.mxu0 0.0
    %1012 = vmatpush1.msra.mxu0 0.0
    %1013 = vmatprep.subr.mxu0 0.0
    %1014 = vmatpush1.msra.mxu0 0.0
    %1015 = vmatprep.subr.mxu0 0.0
    %1016 = vmatpush1.msra.mxu0 0.0
    %1017 = vmatprep.subr.mxu0 0.0
    %1018 = vmatpush1.msra.mxu0 0.0
    %1019 = vmatprep.subr.mxu0 0.0
    %1020 = vmatpush1.msra.mxu0 0.0
    %1021 = vmatprep.subr.mxu0 0.0
    %1022 = vmatpush1.msra.mxu0 0.0
    %1023 = vmatprep.subr.mxu0 0.0
    %1024 = vmatpush1.msra.mxu0 0.0
    %1025 = vmatprep.subr.mxu0 0.0
    %1026 = vmatpush1.msra.mxu0 0.0
    %1027 = vmatprep.subr.mxu0 0.0
    %1028 = vmatpush1.msra.mxu0 0.0
    %1029 = vmatprep.subr.mxu0 0.0
    %1030 = vmatpush1.msra.mxu0 0.0
    %1031 = vmatprep.subr.mxu0 0.0
    %1032 = vmatpush1.msra.mxu0 0.0
    %1033 = vmatprep.subr.mxu0 0.0
    %1034 = vmatpush1.msra.mxu0 0.0
    %1035 = vmatprep.subr.mxu0 0.0
    %1036 = vmatpush1.msra.mxu0 0.0
    %1037 = vmatprep.subr.mxu0 0.0
    %1038 = vmatpush1.msra.mxu0 0.0
    %1039 = vmatprep.subr.mxu0 0.0
    %1040 = vmatpush1.msra.mxu0 0.0
    %1041 = vmatprep.subr.mxu0 0.0
    %1042 = vmatpush1.msra.mxu0 0.0
    %1043 = vmatprep.subr.mxu0 0.0
    %1044 = vmatpush1.msra.mxu0 0.0
    %1045 = vmatprep.subr.mxu0 0.0
    %1046 = vmatpush1.msra.mxu0 0.0
    %1047 = vmatprep.subr.mxu0 0.0
    %1048 = vmatpush1.msra.mxu0 0.0
    %1049 = vmatprep.subr.mxu0 0.0
    %1050 = vmatpush1.msra.mxu0 0.0
    %1051 = vmatprep.subr.mxu0 0.0
    %1052 = vmatpush1.msra.mxu0 0.0
    %1053 = vmatprep.subr.mxu0 0.0
    %1054 = vmatpush1.msra.mxu0 0.0
    %1055 = vmatprep.subr.mxu0 0.0
    %1056 = vmatpush1.msra.mxu0 0.0
    %1057 = vmatprep.subr.mxu0 0.0
    %1058 = vmatpush1.msra.mxu0 0.0
    %1059 = vmatprep.subr.mxu0 0.0
    %1060 = vmatpush1.msra.mxu0 0.0
    %1061 = vmatprep.subr.mxu0 0.0
    %1062 = vmatpush1.msra.mxu0 0.0
    %1063 = vmatprep.mubr.f32.mxu0 0.0
    %1064 = vmatmul.mubr.f32.gmra.mrb[0].mxu0 %v908
    %v1065 = vpop.f32.mrb[0].mxu0
    %v1066 = vadd.f32 0.0, %v1065
    %v1067 = vpop.f32.mrb[0].mxu0
    %v1068 = vadd.f32 0.0, %v1067
    %1069 = vdwg.mxu0
    %1070 = vmatprep.subr.mxu0 %v887
    %1071 = vmatpush1.msra.mxu0 %v886
    %1072 = vmatprep.subr.mxu0 %v893
    %1073 = vmatpush1.msra.mxu0 %v892
    %1074 = vmatprep.subr.mxu0 %v899
    %1075 = vmatpush1.msra.mxu0 %v898
    %1076 = vmatprep.subr.mxu0 %v905
    %1077 = vmatpush1.msra.mxu0 %v904
    %1078 = vmatprep.subr.mxu0 %v926
    %1079 = vmatpush1.msra.mxu0 %v923
    %1080 = vmatprep.subr.mxu0 0.0
    %1081 = vmatpush1.msra.mxu0 0.0
    %1082 = vmatprep.subr.mxu0 0.0
    %1083 = vmatpush1.msra.mxu0 0.0
    %1084 = vmatprep.subr.mxu0 0.0
    %1085 = vmatpush1.msra.mxu0 0.0
    %1086 = vmatprep.subr.mxu0 0.0
    %1087 = vmatpush1.msra.mxu0 0.0
    %1088 = vmatprep.subr.mxu0 0.0
    %1089 = vmatpush1.msra.mxu0 0.0
    %1090 = vmatprep.subr.mxu0 0.0
    %1091 = vmatpush1.msra.mxu0 0.0
    %1092 = vmatprep.subr.mxu0 0.0
    %1093 = vmatpush1.msra.mxu0 0.0
    %1094 = vmatprep.subr.mxu0 0.0
    %1095 = vmatpush1.msra.mxu0 0.0
    %1096 = vmatprep.subr.mxu0 0.0
    %1097 = vmatpush1.msra.mxu0 0.0
    %1098 = vmatprep.subr.mxu0 0.0
    %1099 = vmatpush1.msra.mxu0 0.0
    %1100 = vmatprep.subr.mxu0 0.0
    %1101 = vmatpush1.msra.mxu0 0.0
    %1102 = vmatprep.subr.mxu0 0.0
    %1103 = vmatpush1.msra.mxu0 0.0
    %1104 = vmatprep.subr.mxu0 0.0
    %1105 = vmatpush1.msra.mxu0 0.0
    %1106 = vmatprep.subr.mxu0 0.0
    %1107 = vmatpush1.msra.mxu0 0.0
    %1108 = vmatprep.subr.mxu0 0.0
    %1109 = vmatpush1.msra.mxu0 0.0
    %1110 = vmatprep.subr.mxu0 0.0
    %1111 = vmatpush1.msra.mxu0 0.0
    %1112 = vmatprep.subr.mxu0 0.0
    %1113 = vmatpush1.msra.mxu0 0.0
    %1114 = vmatprep.subr.mxu0 0.0
    %1115 = vmatpush1.msra.mxu0 0.0
    %1116 = vmatprep.subr.mxu0 0.0
    %1117 = vmatpush1.msra.mxu0 0.0
    %1118 = vmatprep.subr.mxu0 0.0
    %1119 = vmatpush1.msra.mxu0 0.0
    %1120 = vmatprep.subr.mxu0 0.0
    %1121 = vmatpush1.msra.mxu0 0.0
    %1122 = vmatprep.subr.mxu0 0.0
    %1123 = vmatpush1.msra.mxu0 0.0
    %1124 = vmatprep.subr.mxu0 0.0
    %1125 = vmatpush1.msra.mxu0 0.0
    %1126 = vmatprep.subr.mxu0 0.0
    %1127 = vmatpush1.msra.mxu0 0.0
    %1128 = vmatprep.subr.mxu0 0.0
    %1129 = vmatpush1.msra.mxu0 0.0
    %1130 = vmatprep.subr.mxu0 0.0
    %1131 = vmatpush1.msra.mxu0 0.0
    %1132 = vmatprep.subr.mxu0 0.0
    %1133 = vmatpush1.msra.mxu0 0.0
    %1134 = vmatprep.mubr.f32.mxu0 0.0
    %1135 = vmatmul.mubr.f32.gmra.mrb[0].mxu0 %v908
    %v1136 = vpop.f32.mrb[0].mxu0
    %v1137 = vadd.f32 0.0, %v1136
    %v1138 = vpop.f32.mrb[0].mxu0
    %v1139 = vadd.f32 0.0, %v1138
    %1140 = vdwg.mxu0
    %v1141 = vmul.f32 %v995, %v546
    %v1142 = vmul.f32 %v997, %v550
    %v1143 = vmul.f32 %v1066, %v554
    %v1144 = vmul.f32 %v1068, %v558
    %v1145 = vmul.f32 %v1137, %v562
    %v1146 = vmul.f32 %v1139, %v566
    %v1147 = vsel %vm281, %v1141, 0.0
    %v1148 = vsel %vm281, %v1142, 0.0
    %v1149 = vadd.f32 %v1147, %v1148
    %v1150 = vsel %vm281, %v1143, 0.0
    %v1151 = vadd.f32 %v1149, %v1150
    %v1152 = vsel %vm281, %v1144, 0.0
    %v1153 = vadd.f32 %v1151, %v1152
    %v1154 = vsel %vm281, %v1145, 0.0
    %v1155 = vadd.f32 %v1153, %v1154
    %v1156 = vsel %vm281, %v1146, 0.0
    %v1157 = vadd.f32 %v1155, %v1156
    %1158 = vadd.xlane.f32.xlu0 %v1157
    %v1159 = vpop.xlane.xlu0 %1158
    %v1160 = vmul.f32 %v1159, 0.001953125
    %v1161 = vmul.f32 %v1141, %v1141
    %v1162 = vmul.f32 %v1142, %v1142
    %v1163 = vmul.f32 %v1143, %v1143
    %v1164 = vmul.f32 %v1144, %v1144
    %v1165 = vmul.f32 %v1145, %v1145
    %v1166 = vmul.f32 %v1146, %v1146
    %v1167 = vsel %vm281, %v1161, 0.0
    %v1168 = vsel %vm281, %v1162, 0.0
    %v1169 = vadd.f32 %v1167, %v1168
    %v1170 = vsel %vm281, %v1163, 0.0
    %v1171 = vadd.f32 %v1169, %v1170
    %v1172 = vsel %vm281, %v1164, 0.0
    %v1173 = vadd.f32 %v1171, %v1172
    %v1174 = vsel %vm281, %v1165, 0.0
    %v1175 = vadd.f32 %v1173, %v1174
    %v1176 = vsel %vm281, %v1166, 0.0
    %v1177 = vadd.f32 %v1175, %v1176
    %1178 = vadd.xlane.f32.xlu0 %v1177
    %v1179 = vpop.xlane.xlu0 %1178
    %v1180 = vmul.f32 %v1179, 0.001953125
    %v1181 = vmul.f32 %v1160, %v1160
    %v1182 = vsub.f32 %v1180, %v1181
    %v1183 = vmax.f32 %v1182, 0.0
    %v1184 = vsub.f32 %v995, %v1160
    %v1185 = vsub.f32 %v997, %v1160
    %v1186 = vsub.f32 %v1066, %v1160
    %v1187 = vsub.f32 %v1068, %v1160
    %v1188 = vsub.f32 %v1137, %v1160
    %v1189 = vsub.f32 %v1139, %v1160
    %v1190 = vadd.f32 %v1183, 1e-05
    %v1191 = vrsqrt.pop %v1190
    %v1192 = vmul.f32 %v1184, %v1191
    %v1193 = vmul.f32 %v1185, %v1191
    %v1194 = vmul.f32 %v1186, %v1191
    %v1195 = vmul.f32 %v1187, %v1191
    %v1196 = vmul.f32 %v1188, %v1191
    %v1197 = vmul.f32 %v1189, %v1191
    %v1198 = vld [vmem:[%s6] sm:$0xf]
    %1200 = vset.pattern.permute.xlu0 0
    %1201 = vperm.xlu0 %1200, %v1198
    %v1202 = vpop.permute.xlu0 %1201
    %v1204 = vmul.f32 %v1192, %v1202
    %v1205 = vmul.f32 %v1193, %v1202
    %v1206 = vmul.f32 %v1194, %v1202
    %v1207 = vmul.f32 %v1195, %v1202
    %v1208 = vmul.f32 %v1196, %v1202
    %v1209 = vmul.f32 %v1197, %v1202
    %v1210 = vld [vmem:[%s7] sm:$0xf]
    %1212 = vset.pattern.permute.xlu0 0
    %1213 = vperm.xlu0 %1212, %v1210
    %v1214 = vpop.permute.xlu0 %1213
    %v1216 = vadd.f32 %v1204, %v1214
    %v1217 = vadd.f32 %v1205, %v1214
    %v1218 = vadd.f32 %v1206, %v1214
    %v1219 = vadd.f32 %v1207, %v1214
    %v1220 = vadd.f32 %v1208, %v1214
    %v1221 = vadd.f32 %v1209, %v1214
    %v1222 = vadd.f32 %v1216, %v43
    %v1223 = vadd.f32 %v1217, %v49
    %v1224 = vadd.f32 %v1218, %v44
    %v1225 = vadd.f32 %v1219, %v50
    %v1226 = vadd.f32 %v1220, %v45
    %v1227 = vadd.f32 %v1221, %v51
    %v1228 = vmax.f32 %v1222, 0.0
    %v1229 = vmax.f32 %v1223, 0.0
    %v1230 = vmax.f32 %v1224, 0.0
    %v1231 = vmax.f32 %v1225, 0.0
    %v1232 = vmax.f32 %v1226, 0.0
    %v1233 = vmax.f32 %v1227, 0.0
    %v1240 = vcombine.low %v1228, %v1229
    %v1241 = vcombine.low %v1230, %v1231
    %v1242 = vcombine.low %v1232, %v1233
    %1246 = vst [vmem:[#allocation5] sm:$0xff] %v1240
    %1247 = vst [vmem:[#allocation5 + $0x8] sm:$0xff] %v1241
    %1248 = vst [vmem:[#allocation5 + $0x10] sm:$0xff] %v1242
    // Predicated region
    $region38: #{tpu_custom_call.1} parent=1 // pred_check
      _
    $region39: #{tpu_custom_call.1} parent=1 // pred_check_branch
      %1250 = sbr.rel (0) target = $region41
    $region40: #{tpu_custom_call.1} parent=1 // pred_region
      %s1252 = ssub.s32 384, 384
      %1253 = vsyncadd [#allocation4], %s1252
      %s1255 = sshll.u32 [#allocation5], 4
      %s1256 = int_to_ptr.vmem [resolvable:$true] %s1255
      %1258 = dma.vmem_to_hbm [thread:$0]  %s1256, 384, %s8, [#allocation4]
    $region41: #{tpu_custom_call.1} parent=1 // pred_fallthru
      _
    // Predicated region
    $region42: #{tpu_custom_call.1} parent=1 // pred_check
      _
    $region43: #{tpu_custom_call.1} parent=1 // pred_check_branch
      %1260 = sbr.rel (0) target = $region45
    $region44: #{tpu_custom_call.1} parent=1 // pred_region
      %1261 = dma.done [#allocation4], 384
    $region45: #{tpu_custom_call.1} parent=1 // pred_fallthru
      _
    %1262 = vsyncpa [#allocation3], 1
    %1263 = vsyncpa [#allocation4], 1

</llo_original>
